<compile_context>
chip_gen: v7x
topology: tpu7x:2x2x1
jax: 0.10.0
libtpu: 0.0.40
codegen_flags: <defaults>
</compile_context>

<pallas_src>
import jax
import jax.numpy as jnp
from jax.experimental import pallas as pl
from jax.experimental.pallas import tpu as pltpu


def convlstm_kernel(xT_ref, wT_ref, b_ref, c_ref, h_out_ref, c_out_ref):
    # xT_ref : (1, K, Mb)   bf16  im2col'd [x;h] patch, channel-major, spatial on lanes
    # wT_ref : (4*hid, K)   bf16  conv weight, gate-channel major
    # b_ref  : (4*hid, 1)   f32   conv bias (lane-broadcast column)
    # c_ref  : (1, hid, Mb) f32   previous cell state (channel-major)
    # h_out_ref, c_out_ref : (1, hid, Mb) f32
    hid = c_ref.shape[1]

    # Single MXU matmul with K = KH*KW*Ctot, f32 accumulation.
    gates = jnp.dot(wT_ref[...], xT_ref[0],
                    preferred_element_type=jnp.float32)      # (4*hid, Mb)
    gates = gates + b_ref[...]                               # bias, lane-broadcast

    # Gate split = aligned sublane slices (multiples of 8): no lane shuffles,
    # everything stays 128-lane dense.
    i = jax.nn.sigmoid(gates[0 * hid:1 * hid, :])
    f = jax.nn.sigmoid(gates[1 * hid:2 * hid, :])
    o = jax.nn.sigmoid(gates[2 * hid:3 * hid, :])
    g = jnp.tanh(gates[3 * hid:4 * hid, :])

    c_prev = c_ref[0]                                        # (hid, Mb) f32
    c_next = f * c_prev + i * g
    h_next = o * jnp.tanh(c_next)

    c_out_ref[0] = c_next                                    # full-width dense stores
    h_out_ref[0] = h_next


def convlstm_cell(x, h, c, weight, bias):
    """Forward of ConvLSTMCell.

    x      : (B, Cin, H, W)              NCHW (PyTorch convention)
    h, c   : (B, hid, H, W)
    weight : (4*hid, Cin+hid, KH, KW)    nn.Conv2d OIHW
    bias   : (4*hid,)
    returns (h_next, c_next) in NCHW.
    """
    B, Cin, H, W = x.shape
    hid = h.shape[1]
    G4, Ctot, KH, KW = weight.shape
    assert Ctot == Cin + hid and G4 == 4 * hid
    ph, pw = KH // 2, KW // 2
    HW = H * W
    K = KH * KW * Ctot

    # Spatial tile of 128 lanes per grid step when possible (lane-dense blocks).
    Mb = 128 if HW % 128 == 0 else HW
    nM = HW // Mb

    # ---- wrapper-side prep (cheap XLA glue) ----
    # concat + NHWC + zero-pad, in bf16 to halve bytes moved.
    combined = jnp.concatenate([x, h], axis=1).astype(jnp.bfloat16)     # (B,Ctot,H,W)
    comb_nhwc = jnp.transpose(combined, (0, 2, 3, 1))                   # (B,H,W,Ctot)
    xpad = jnp.pad(comb_nhwc, ((0, 0), (ph, ph), (pw, pw), (0, 0)))     # (B,Hp,Wp,Ctot)

    # Channel-major im2col: xT[b, (kh*KW+kw)*Ctot + c, h*W + w] = xpad[b, h+kh, w+kw, c]
    taps = [xpad[:, kh:kh + H, kw:kw + W, :]
            for kh in range(KH) for kw in range(KW)]                    # each (B,H,W,Ctot)
    patches = jnp.stack(taps, axis=1)                                   # (B,KH*KW,H,W,Ctot)
    xT = jnp.transpose(patches, (0, 1, 4, 2, 3)).reshape(B, K, HW)      # (B,K,HW) bf16

    # Weight OIHW -> (4*hid, K) matching xT's K ordering; bias as a column.
    wT = jnp.transpose(weight, (0, 2, 3, 1)).reshape(G4, K).astype(jnp.bfloat16)
    bT = bias.reshape(G4, 1).astype(jnp.float32)

    # Cell state stays channel-major (NCHW): just flatten spatial.
    c_flat = c.reshape(B, hid, HW).astype(jnp.float32)

    h_flat, c_next_flat = pl.pallas_call(
        convlstm_kernel,
        out_shape=(jax.ShapeDtypeStruct((B, hid, HW), jnp.float32),
                   jax.ShapeDtypeStruct((B, hid, HW), jnp.float32)),
        grid_spec=pltpu.PrefetchScalarGridSpec(
            num_scalar_prefetch=0,
            grid=(B, nM),
            in_specs=[
                pl.BlockSpec((1, K, Mb), lambda b, m: (b, 0, m)),
                pl.BlockSpec((G4, K), lambda b, m: (0, 0)),
                pl.BlockSpec((G4, 1), lambda b, m: (0, 0)),
                pl.BlockSpec((1, hid, Mb), lambda b, m: (b, 0, m)),
            ],
            out_specs=[
                pl.BlockSpec((1, hid, Mb), lambda b, m: (b, 0, m)),
                pl.BlockSpec((1, hid, Mb), lambda b, m: (b, 0, m)),
            ],
        ),
        compiler_params=pltpu.CompilerParams(
            dimension_semantics=("parallel", "parallel"),
            vmem_limit_bytes=32 * 1024 * 1024,
        ),
    )(xT, wT, bT, c_flat)

    # Outputs are already channel-major: plain reshape back to NCHW.
    return (h_flat.reshape(B, hid, H, W),
            c_next_flat.reshape(B, hid, H, W))


def convlstm_ref(x, h, c, weight, bias):
    """Pure-JAX f32 reference (mirrors the PyTorch forward)."""
    KH, KW = weight.shape[2], weight.shape[3]
    combined = jnp.concatenate([x, h], axis=1)
    gates = jax.lax.conv_general_dilated(
        combined, weight, window_strides=(1, 1),
        padding=((KH // 2, KH // 2), (KW // 2, KW // 2)),
        dimension_numbers=("NCHW", "OIHW", "NCHW"),
    ) + bias[None, :, None, None]
    hid = h.shape[1]
    i, f, o, g = jnp.split(gates, 4, axis=1)
    i, f, o = jax.nn.sigmoid(i), jax.nn.sigmoid(f), jax.nn.sigmoid(o)
    g = jnp.tanh(g)
    c_next = f * c + i * g
    h_next = o * jnp.tanh(c_next)
    return h_next, c_next


if __name__ == "__main__":
    # Small deterministic setup: batch=2, in_ch=4, hid_ch=32, spatial=16x16, k=(3,3)
    B, Cin, hid, H, W = 2, 4, 32, 16, 16
    KH, KW = 3, 3

    key = jax.random.PRNGKey(0)
    kx, kh_, kc, kw_, kb = jax.random.split(key, 5)
    x = jax.random.normal(kx, (B, Cin, H, W), jnp.float32)
    h0 = jax.random.normal(kh_, (B, hid, H, W), jnp.float32)
    c0 = jax.random.normal(kc, (B, hid, H, W), jnp.float32)
    # Deterministic synthetic Conv2d parameters (OIHW / (out,) like nn.Conv2d).
    weight = 0.1 * jax.random.normal(kw_, (4 * hid, Cin + hid, KH, KW), jnp.float32)
    bias = 0.1 * jax.random.normal(kb, (4 * hid,), jnp.float32)

    h_next, c_next = convlstm_cell(x, h0, c0, weight, bias)
    jax.block_until_ready((h_next, c_next))

    # Correctness vs the f32 reference of the PyTorch semantics.  Tolerance is
    # loosened because matmul operands are bf16 (per perf review); accumulation
    # and the epilogue are f32.
    h_ref, c_ref = convlstm_ref(x, h0, c0, weight, bias)
    assert jnp.allclose(h_next, h_ref, atol=5e-2, rtol=5e-2), "h_next mismatch"
    assert jnp.allclose(c_next, c_ref, atol=5e-2, rtol=5e-2), "c_next mismatch"

    print("KERNEL_OK")
</pallas_src>

<mosaic_0001>
module attributes {stable_mosaic.version = 11 : i64} {
  func.func @convlstm_kernel(%arg0: i32, %arg1: i32, %arg2: memref<1x324x128xbf16, #tpu.memory_space<vmem>>, %arg3: memref<128x324xbf16, #tpu.memory_space<vmem>>, %arg4: memref<128x1xf32, #tpu.memory_space<vmem>>, %arg5: memref<1x32x128xf32, #tpu.memory_space<vmem>>, %arg6: memref<1x32x128xf32, #tpu.memory_space<vmem>>, %arg7: memref<1x32x128xf32, #tpu.memory_space<vmem>>) attributes {dimension_semantics = [#tpu.dimension_semantics<parallel>, #tpu.dimension_semantics<parallel>], iteration_bounds = array<i64: 2, 2>, scalar_prefetch = 0 : i64, scratch_operands = 0 : i64, tpu.core_type = #tpu.core_type<tc>, window_params = [{transform_indices = @transform_0, window_bounds = array<i64: 1, 324, 128>}, {pipeline_mode = #tpu.pipeline_mode<synchronous>, transform_indices = @transform_1, window_bounds = array<i64: 128, 324>}, {pipeline_mode = #tpu.pipeline_mode<synchronous>, transform_indices = @transform_2, window_bounds = array<i64: 128, 1>}, {transform_indices = @transform_3, window_bounds = array<i64: 1, 32, 128>}, {transform_indices = @transform_4, window_bounds = array<i64: 1, 32, 128>}, {transform_indices = @transform_5, window_bounds = array<i64: 1, 32, 128>}]} {
    %c0 = arith.constant 0 : index
    %c0_0 = arith.constant 0 : index
    %0 = vector.load %arg3[%c0, %c0_0] : memref<128x324xbf16, #tpu.memory_space<vmem>>, vector<128x324xbf16>
    %c0_1 = arith.constant 0 : index
    %c0_2 = arith.constant 0 : index
    %c0_3 = arith.constant 0 : index
    %1 = vector.load %arg2[%c0_1, %c0_2, %c0_3] : memref<1x324x128xbf16, #tpu.memory_space<vmem>>, vector<1x324x128xbf16>
    %2 = vector.shape_cast %1 : vector<1x324x128xbf16> to vector<324x128xbf16>
    %cst = arith.constant dense<0.000000e+00> : vector<128x128xf32>
    %3 = tpu.matmul %0, %2, %cst {dimension_numbers = #tpu.dot_dimension_numbers<[1], [0], [0], [1], [0, 0, 1, 1], [], []>} : vector<128x324xbf16>, vector<324x128xbf16>, vector<128x128xf32> -> vector<128x128xf32>
    %c0_4 = arith.constant 0 : index
    %c0_5 = arith.constant 0 : index
    %4 = vector.load %arg4[%c0_4, %c0_5] : memref<128x1xf32, #tpu.memory_space<vmem>>, vector<128x1xf32>
    %5 = vector.broadcast %4 : vector<128x1xf32> to vector<128x128xf32>
    %6 = arith.addf %3, %5 : vector<128x128xf32>
    %7 = vector.extract_strided_slice %6 {offsets = [0, 0], sizes = [32, 128], strides = [1, 1]} : vector<128x128xf32> to vector<32x128xf32>
    %8 = arith.negf %7 : vector<32x128xf32>
    %9 = math.exp %8 : vector<32x128xf32>
    %cst_6 = arith.constant 1.000000e+00 : f32
    %10 = vector.broadcast %cst_6 : f32 to vector<32x128xf32>
    %11 = arith.addf %10, %9 : vector<32x128xf32>
    %12 = arith.divf %10, %11 : vector<32x128xf32>
    %13 = vector.extract_strided_slice %6 {offsets = [32, 0], sizes = [32, 128], strides = [1, 1]} : vector<128x128xf32> to vector<32x128xf32>
    %14 = arith.negf %13 : vector<32x128xf32>
    %15 = math.exp %14 : vector<32x128xf32>
    %cst_7 = arith.constant 1.000000e+00 : f32
    %16 = vector.broadcast %cst_7 : f32 to vector<32x128xf32>
    %17 = arith.addf %16, %15 : vector<32x128xf32>
    %18 = arith.divf %16, %17 : vector<32x128xf32>
    %19 = vector.extract_strided_slice %6 {offsets = [64, 0], sizes = [32, 128], strides = [1, 1]} : vector<128x128xf32> to vector<32x128xf32>
    %20 = arith.negf %19 : vector<32x128xf32>
    %21 = math.exp %20 : vector<32x128xf32>
    %cst_8 = arith.constant 1.000000e+00 : f32
    %22 = vector.broadcast %cst_8 : f32 to vector<32x128xf32>
    %23 = arith.addf %22, %21 : vector<32x128xf32>
    %24 = arith.divf %22, %23 : vector<32x128xf32>
    %25 = vector.extract_strided_slice %6 {offsets = [96, 0], sizes = [32, 128], strides = [1, 1]} : vector<128x128xf32> to vector<32x128xf32>
    %26 = math.tanh %25 : vector<32x128xf32>
    %c0_9 = arith.constant 0 : index
    %c0_10 = arith.constant 0 : index
    %c0_11 = arith.constant 0 : index
    %27 = vector.load %arg5[%c0_9, %c0_10, %c0_11] : memref<1x32x128xf32, #tpu.memory_space<vmem>>, vector<1x32x128xf32>
    %28 = vector.shape_cast %27 : vector<1x32x128xf32> to vector<32x128xf32>
    %29 = arith.mulf %18, %28 : vector<32x128xf32>
    %30 = arith.mulf %12, %26 : vector<32x128xf32>
    %31 = arith.addf %29, %30 : vector<32x128xf32>
    %32 = math.tanh %31 : vector<32x128xf32>
    %33 = arith.mulf %24, %32 : vector<32x128xf32>
    %c0_12 = arith.constant 0 : index
    %c0_13 = arith.constant 0 : index
    %c0_14 = arith.constant 0 : index
    %34 = vector.load %arg7[%c0_12, %c0_13, %c0_14] : memref<1x32x128xf32, #tpu.memory_space<vmem>>, vector<1x32x128xf32>
    %35 = vector.shape_cast %34 : vector<1x32x128xf32> to vector<32x128xf32>
    %36 = vector.shape_cast %31 : vector<32x128xf32> to vector<1x32x128xf32>
    tpu.vector_store %arg7[%c0_12, %c0_13, %c0_14], %36 {strides = array<i32>} : memref<1x32x128xf32, #tpu.memory_space<vmem>>, vector<1x32x128xf32>,
    %c0_15 = arith.constant 0 : index
    %c0_16 = arith.constant 0 : index
    %c0_17 = arith.constant 0 : index
    %37 = vector.load %arg6[%c0_15, %c0_16, %c0_17] : memref<1x32x128xf32, #tpu.memory_space<vmem>>, vector<1x32x128xf32>
    %38 = vector.shape_cast %37 : vector<1x32x128xf32> to vector<32x128xf32>
    %39 = vector.shape_cast %33 : vector<32x128xf32> to vector<1x32x128xf32>
    tpu.vector_store %arg6[%c0_15, %c0_16, %c0_17], %39 {strides = array<i32>} : memref<1x32x128xf32, #tpu.memory_space<vmem>>, vector<1x32x128xf32>,
    return
  }
  func.func @transform_0(%arg0: i32, %arg1: i32) -> (i32, i32, i32) {
    %c0_i32 = arith.constant 0 : i32
    %c0_i32_0 = arith.constant 0 : i32
    return %arg0, %c0_i32, %arg1 : i32, i32, i32
  }
  func.func @transform_1(%arg0: i32, %arg1: i32) -> (i32, i32) {
    %c0_i32 = arith.constant 0 : i32
    %c0_i32_0 = arith.constant 0 : i32
    %c0_i32_1 = arith.constant 0 : i32
    return %c0_i32, %c0_i32_0 : i32, i32
  }
  func.func @transform_2(%arg0: i32, %arg1: i32) -> (i32, i32) {
    %c0_i32 = arith.constant 0 : i32
    %c0_i32_0 = arith.constant 0 : i32
    %c0_i32_1 = arith.constant 0 : i32
    return %c0_i32, %c0_i32_0 : i32, i32
  }
  func.func @transform_3(%arg0: i32, %arg1: i32) -> (i32, i32, i32) {
    %c0_i32 = arith.constant 0 : i32
    %c0_i32_0 = arith.constant 0 : i32
    return %arg0, %c0_i32, %arg1 : i32, i32, i32
  }
  func.func @transform_4(%arg0: i32, %arg1: i32) -> (i32, i32, i32) {
    %c0_i32 = arith.constant 0 : i32
    %c0_i32_0 = arith.constant 0 : i32
    return %arg0, %c0_i32, %arg1 : i32, i32, i32
  }
  func.func @transform_5(%arg0: i32, %arg1: i32) -> (i32, i32, i32) {
    %c0_i32 = arith.constant 0 : i32
    %c0_i32_0 = arith.constant 0 : i32
    return %arg0, %c0_i32, %arg1 : i32, i32, i32
  }
}

</mosaic_0001>

<llo_original>
// kernel: tpu_custom_call.1
$region0: #{tpu_custom_call.1}
  #allocation0 [shape = 'u32[]', space=smem, size = 0x4, offset = 0x4, fixed_abs, tag = 'smem constant byte address 0x4 - core index']
  #allocation1 [shape = 'u32[144,128]{1,0:T(1,128)}', space=vmem, size = 0x12000, scoped, tag = 'internal scratch']
  %s0 = inlined_call_operand.vmem [shape: bf16[2,324,256], index: 0, kind: input, shape index: {}]
  %s1 = inlined_call_operand.vmem [shape: bf16[128,324], index: 1, kind: input, shape index: {}]
  %s2 = inlined_call_operand.vmem [shape: f32[128,1], index: 2, kind: input, shape index: {}]
  %s3 = inlined_call_operand.vmem [shape: f32[2,32,256], index: 3, kind: input, shape index: {}]
  %s4 = inlined_call_operand.hbm [shape: f32[2,32,256], index: 4, kind: output, shape index: {0}]
  %s5 = inlined_call_operand.hbm [shape: f32[2,32,256], index: 5, kind: output, shape index: {1}]
  %6 = xla_tuple %s4, %s5
  %s7 = sld [smem:[#allocation0]]
  $region136: #{tpu_custom_call.1} parent=0
    _
  %s9 = ssub.s32 1, %s7
  %s10 = scalar_select 0, %s9, %s7
  $region1: #{tpu_custom_call.1} parent=0
    #allocation2 [shape = 'u8[167936]{0}', space=vmem, size = 0x29000, scoped, tag = 'input window, operand 0']
    #allocation3 [shape = 'u8[32768]{0}', space=vmem, size = 0x8000, scoped, tag = 'input window, operand 3']
    #allocation4 [shape = 'u8[32768]{0}', space=vmem, size = 0x8000, scoped, tag = 'output window, operand 0']
    #allocation5 [shape = 's32[2]{0}', space=sflag, size = 0x8, scoped, tag = 'scoped memory for tpu_custom_call.1']
    #allocation6 [shape = 'u8[32768]{0}', space=vmem, size = 0x8000, scoped, tag = 'output window, operand 1']
    #allocation7 [shape = 's32[2]{0}', space=sflag, size = 0x8, scoped, tag = 'scoped memory for tpu_custom_call.1']
    %11 = vsyncpa [#allocation5], 0
    %s12 = scalar_lea.sflag [#allocation5], 1
    %13 = vsyncpa %s12, 0
    %14 = vsyncpa [#allocation7], 0
    %s15 = scalar_lea.sflag [#allocation7], 1
    %16 = vsyncpa %s15, 0
    loop: start=0, step=1, limit=6
    $region2: #{tpu_custom_call.1} parent=1 // loop_pre_header
      _
    $region3: #{tpu_custom_call.1} parent=1 // loop_header
      %s18 = sphi 0, %s22
      %p19 = scmp.ge.s32.totalorder %s18, 6
      %s25 = sphi 0, %s37
      %s26 = sphi 0, %s33
      %s27 = sphi 0, %s25
      %s28 = sphi 0, %s26
      %s29 = sphi 0, %s27
      %s30 = sphi 0, %s28
      %s42 = sphi 0, %s44
      %s45 = sphi 0, %s42
      %s46 = sphi 0, %s45
      %s62 = sphi 0, %s46
      %s66 = sphi 0, %s66
      %s68 = sphi 0, %s66
      %s69 = sphi 0, %s68
      %s83 = sphi 0, %s69
      %s87 = sphi 0, %s87
      %s89 = sphi 0, %s87
      %s90 = sphi 0, %s89
      %s104 = sphi 0, %s90
      %s112 = sphi 0, %s114
      %s115 = sphi 0, %s112
      %s116 = sphi 0, %s115
      %s132 = sphi 0, %s116
      %s140 = sphi 0, %s142
      %s143 = sphi 0, %s140
      %s144 = sphi 0, %s143
      %s160 = sphi 0, %s144
      %s168 = sphi 0, %s170
      %s171 = sphi 0, %s168
      %s172 = sphi 0, %s171
      %s188 = sphi 0, %s172
    $region4: #{tpu_custom_call.1} parent=1 // loop_header_branch
      %21 = sbr.rel (%p19) target = $region8
    $region5: #{tpu_custom_call.1} parent=1 // loop_body
      %s23 = ssub.s32 %s18, 1
      %s24 = ssub.s32 %s18, 2
      %s31 = sadd.s32 1, %s26
      %p32 = scmp.ge.s32.totalorder %s31, 2
      %s33 = scalar_select %p32, 0, %s31
      %s34 = sadd.s32 1, %s25
      %s35 = scalar_select %p32, %s34, %s25
      %p36 = scmp.ge.s32.totalorder %s35, 2
      %s37 = scalar_select %p36, 0, %s35
      %s38 = ssub.s32 %s25, %s37
      %s39 = ssub.s32 %s26, %s33
      %s40 = sor.u32 %s38, %s39
      %p41 = scmp.eq.s32.totalorder %s40, 0
      %s43 = sadd.s32 %s42, 1
      %s44 = scalar_select %p41, %s42, %s43
      %p47 = pneg %p41
      %p48 = scmp.eq.s32.totalorder %s18, 3
      %p49 = por %p47, %p48
      %p50 = scmp.ne.s32.totalorder %s42, %s45
      %p51 = scmp.eq.s32.totalorder %s18, 0
      %p52 = por %p50, %p51
      %p53 = scmp.ne.s32.totalorder %s42, %s45
      %p54 = scmp.eq.s32.totalorder %s23, 3
      %p55 = por %p53, %p54
      %p56 = scmp.ne.s32.totalorder %s45, %s46
      %p57 = scmp.eq.s32.totalorder %s23, 0
      %p58 = por %p56, %p57
      %p59 = scmp.ne.s32.totalorder %s45, %s46
      %p60 = scmp.eq.s32.totalorder %s24, 3
      %p61 = por %p59, %p60
      %p63 = scmp.ne.s32.totalorder %s46, %s62
      %p64 = scmp.eq.s32.totalorder %s24, 0
      %p65 = por %p63, %p64
      %s67 = sadd.s32 %s66, 1
      %p70 = scmp.eq.s32.totalorder %s18, 3
      %p71 = scmp.ne.s32.totalorder %s66, %s68
      %p72 = scmp.eq.s32.totalorder %s18, 0
      %p73 = por %p71, %p72
      %p74 = scmp.ne.s32.totalorder %s66, %s68
      %p75 = scmp.eq.s32.totalorder %s23, 3
      %p76 = por %p74, %p75
      %p77 = scmp.ne.s32.totalorder %s68, %s69
      %p78 = scmp.eq.s32.totalorder %s23, 0
      %p79 = por %p77, %p78
      %p80 = scmp.ne.s32.totalorder %s68, %s69
      %p81 = scmp.eq.s32.totalorder %s24, 3
      %p82 = por %p80, %p81
      %p84 = scmp.ne.s32.totalorder %s69, %s83
      %p85 = scmp.eq.s32.totalorder %s24, 0
      %p86 = por %p84, %p85
      %s88 = sadd.s32 %s87, 1
      %p91 = scmp.eq.s32.totalorder %s18, 3
      %p92 = scmp.ne.s32.totalorder %s87, %s89
      %p93 = scmp.eq.s32.totalorder %s18, 0
      %p94 = por %p92, %p93
      %p95 = scmp.ne.s32.totalorder %s87, %s89
      %p96 = scmp.eq.s32.totalorder %s23, 3
      %p97 = por %p95, %p96
      %p98 = scmp.ne.s32.totalorder %s89, %s90
      %p99 = scmp.eq.s32.totalorder %s23, 0
      %p100 = por %p98, %p99
      %p101 = scmp.ne.s32.totalorder %s89, %s90
      %p102 = scmp.eq.s32.totalorder %s24, 3
      %p103 = por %p101, %p102
      %p105 = scmp.ne.s32.totalorder %s90, %s104
      %p106 = scmp.eq.s32.totalorder %s24, 0
      %p107 = por %p105, %p106
      %s108 = ssub.s32 %s25, %s37
      %s109 = ssub.s32 %s26, %s33
      %s110 = sor.u32 %s108, %s109
      %p111 = scmp.eq.s32.totalorder %s110, 0
      %s113 = sadd.s32 %s112, 1
      %s114 = scalar_select %p111, %s112, %s113
      %p117 = pneg %p111
      %p118 = scmp.eq.s32.totalorder %s18, 3
      %p119 = por %p117, %p118
      %p120 = scmp.ne.s32.totalorder %s112, %s115
      %p121 = scmp.eq.s32.totalorder %s18, 0
      %p122 = por %p120, %p121
      %p123 = scmp.ne.s32.totalorder %s112, %s115
      %p124 = scmp.eq.s32.totalorder %s23, 3
      %p125 = por %p123, %p124
      %p126 = scmp.ne.s32.totalorder %s115, %s116
      %p127 = scmp.eq.s32.totalorder %s23, 0
      %p128 = por %p126, %p127
      %p129 = scmp.ne.s32.totalorder %s115, %s116
      %p130 = scmp.eq.s32.totalorder %s24, 3
      %p131 = por %p129, %p130
      %p133 = scmp.ne.s32.totalorder %s116, %s132
      %p134 = scmp.eq.s32.totalorder %s24, 0
      %p135 = por %p133, %p134
      %s136 = ssub.s32 %s25, %s37
      %s137 = ssub.s32 %s26, %s33
      %s138 = sor.u32 %s136, %s137
      %p139 = scmp.eq.s32.totalorder %s138, 0
      %s141 = sadd.s32 %s140, 1
      %s142 = scalar_select %p139, %s140, %s141
      %p145 = pneg %p139
      %p146 = scmp.eq.s32.totalorder %s18, 3
      %p147 = por %p145, %p146
      %p148 = scmp.ne.s32.totalorder %s140, %s143
      %p149 = scmp.eq.s32.totalorder %s18, 0
      %p150 = por %p148, %p149
      %p151 = scmp.ne.s32.totalorder %s140, %s143
      %p152 = scmp.eq.s32.totalorder %s23, 3
      %p153 = por %p151, %p152
      %p154 = scmp.ne.s32.totalorder %s143, %s144
      %p155 = scmp.eq.s32.totalorder %s23, 0
      %p156 = por %p154, %p155
      %p157 = scmp.ne.s32.totalorder %s143, %s144
      %p158 = scmp.eq.s32.totalorder %s24, 3
      %p159 = por %p157, %p158
      %p161 = scmp.ne.s32.totalorder %s144, %s160
      %p162 = scmp.eq.s32.totalorder %s24, 0
      %p163 = por %p161, %p162
      %s164 = ssub.s32 %s25, %s37
      %s165 = ssub.s32 %s26, %s33
      %s166 = sor.u32 %s164, %s165
      %p167 = scmp.eq.s32.totalorder %s166, 0
      %s169 = sadd.s32 %s168, 1
      %s170 = scalar_select %p167, %s168, %s169
      %p173 = pneg %p167
      %p174 = scmp.eq.s32.totalorder %s18, 3
      %p175 = por %p173, %p174
      %p176 = scmp.ne.s32.totalorder %s168, %s171
      %p177 = scmp.eq.s32.totalorder %s18, 0
      %p178 = por %p176, %p177
      %p179 = scmp.ne.s32.totalorder %s168, %s171
      %p180 = scmp.eq.s32.totalorder %s23, 3
      %p181 = por %p179, %p180
      %p182 = scmp.ne.s32.totalorder %s171, %s172
      %p183 = scmp.eq.s32.totalorder %s23, 0
      %p184 = por %p182, %p183
      %p185 = scmp.ne.s32.totalorder %s171, %s172
      %p186 = scmp.eq.s32.totalorder %s24, 3
      %p187 = por %p185, %p186
      %p189 = scmp.ne.s32.totalorder %s172, %s188
      %p190 = scmp.eq.s32.totalorder %s24, 0
      %p191 = por %p189, %p190
      %p192 = scmp.le.s32.totalorder 1, %s18
      %p193 = scmp.lt.s32.totalorder %s18, 5
      %p194 = pnand %p192, %p193
      %p195 = pneg %p194
      // Predicated region
      $region9: #{tpu_custom_call.1} parent=5 // pred_check
        _
      $region10: #{tpu_custom_call.1} parent=5 // pred_check_branch
        %197 = sbr.rel (%p194) target = $region12
      $region11: #{tpu_custom_call.1} parent=5 // pred_region
        %s198 = ssub.s32 %s18, 1
        // Predicated region
        $region13: #{tpu_custom_call.1} parent=11 // pred_check
          %p199 = pneg %p79
        $region14: #{tpu_custom_call.1} parent=11 // pred_check_branch
          %201 = sbr.rel (%p199) target = $region16
        $region15: #{tpu_custom_call.1} parent=11 // pred_region
          _
        $region16: #{tpu_custom_call.1} parent=11 // pred_fallthru
          _
        // Predicated region
        $region17: #{tpu_custom_call.1} parent=11 // pred_check
          %p202 = pneg %p100
        $region18: #{tpu_custom_call.1} parent=11 // pred_check_branch
          %204 = sbr.rel (%p202) target = $region20
        $region19: #{tpu_custom_call.1} parent=11 // pred_region
          _
        $region20: #{tpu_custom_call.1} parent=11 // pred_fallthru
          _
      $region12: #{tpu_custom_call.1} parent=5 // pred_fallthru
        _
      %p205 = scmp.lt.s32.totalorder %s18, 4
      // Predicated region
      $region21: #{tpu_custom_call.1} parent=5 // pred_check
        %p206 = pneg %p205
      $region22: #{tpu_custom_call.1} parent=5 // pred_check_branch
        %208 = sbr.rel (%p206) target = $region24
      $region23: #{tpu_custom_call.1} parent=5 // pred_region
        // Predicated region
        $region25: #{tpu_custom_call.1} parent=23 // pred_check
          %p209 = pneg %p52
        $region26: #{tpu_custom_call.1} parent=23 // pred_check_branch
          %211 = sbr.rel (%p209) target = $region28
        $region27: #{tpu_custom_call.1} parent=23 // pred_region
          %s212 = sand.u32 %s42, 1
          %s213 = sand.u32 %s42, 1
          %s214 = smul.addr %s213, 164
          %s215 = scalar_lea.vmem [#allocation2], %s214
          %s216 = smul.addr %s25, 82
          %s217 = sadd.s32 %s26, %s216
          %s218 = smul.addr %s217, 4
          %s219 = scalar_lea.vmem %s0, %s218
          // Predicated region
          $region29: #{tpu_custom_call.1} parent=27 // pred_check
            _
          $region30: #{tpu_custom_call.1} parent=27 // pred_check_branch
            %221 = sbr.rel (0) target = $region32
          $region31: #{tpu_custom_call.1} parent=27 // pred_region
            // Predicated region
            $region33: #{tpu_custom_call.1} parent=31 // pred_check
              _
            $region34: #{tpu_custom_call.1} parent=31 // pred_check_branch
              %223 = sbr.rel target = $region36
            $region35: #{tpu_custom_call.1} parent=31 // pred_region
              // Predicated region
              $region48: #{tpu_custom_call.1} parent=35 // pred_check
                _
              $region49: #{tpu_custom_call.1} parent=35 // pred_check_branch
                %318 = sbr.rel (0) target = $region51
              $region50: #{tpu_custom_call.1} parent=35 // pred_region
                loop: start=0, step=1, limit=1
                $region52: #{tpu_custom_call.1} parent=50 // loop_pre_header
                  _
                $region53: #{tpu_custom_call.1} parent=50 // loop_header
                  %s320 = sphi 0, %s324
                  %p321 = scmp.ge.s32.totalorder %s320, 1
                  %s325 = sphi %s219, %s219
                  %s326 = sphi %s215, %s215
                $region54: #{tpu_custom_call.1} parent=50 // loop_header_branch
                  %323 = sbr.rel (%p321) target = $region58
                $region55: #{tpu_custom_call.1} parent=50 // loop_body
                  _
                $region56: #{tpu_custom_call.1} parent=50 // loop_footer
                  %s324 = sadd.s32 1, %s320
                $region57: #{tpu_custom_call.1} parent=50 // loop_footer_branch
                  %319 = sbr.rel target = $region53
                $region58: #{tpu_custom_call.1} parent=50 // loop_exit
                  _
                loop: start=0, step=1, limit=1
                $region59: #{tpu_custom_call.1} parent=50 // loop_pre_header
                  _
                $region60: #{tpu_custom_call.1} parent=50 // loop_header
                  %s329 = sphi 0, %s333
                  %p330 = scmp.ge.s32.totalorder %s329, 1
                  %s334 = sphi %s219, %s219
                  %s335 = sphi %s215, %s215
                $region61: #{tpu_custom_call.1} parent=50 // loop_header_branch
                  %332 = sbr.rel (%p330) target = $region65
                $region62: #{tpu_custom_call.1} parent=50 // loop_body
                  %v336 = vld [vmem:[%s334] sm:$0xf]
                  %337 = vst [vmem:[%s335] sm:$0xf] %v336
                  %v338 = vld [vmem:[%s334 + $0x8] sm:$0xf]
                  %339 = vst [vmem:[%s335 + $0x4] sm:$0xf] %v338
                  %v340 = vld [vmem:[%s334 + $0x10] sm:$0xf]
                  %341 = vst [vmem:[%s335 + $0x8] sm:$0xf] %v340
                  %v342 = vld [vmem:[%s334 + $0x18] sm:$0xf]
                  %343 = vst [vmem:[%s335 + $0xc] sm:$0xf] %v342
                  %v344 = vld [vmem:[%s334 + $0x20] sm:$0xf]
                  %345 = vst [vmem:[%s335 + $0x10] sm:$0xf] %v344
                  %v346 = vld [vmem:[%s334 + $0x28] sm:$0xf]
                  %347 = vst [vmem:[%s335 + $0x14] sm:$0xf] %v346
                  %v348 = vld [vmem:[%s334 + $0x30] sm:$0xf]
                  %349 = vst [vmem:[%s335 + $0x18] sm:$0xf] %v348
                  %v350 = vld [vmem:[%s334 + $0x38] sm:$0xf]
                  %351 = vst [vmem:[%s335 + $0x1c] sm:$0xf] %v350
                  %v352 = vld [vmem:[%s334 + $0x40] sm:$0xf]
                  %353 = vst [vmem:[%s335 + $0x20] sm:$0xf] %v352
                  %v354 = vld [vmem:[%s334 + $0x48] sm:$0xf]
                  %355 = vst [vmem:[%s335 + $0x24] sm:$0xf] %v354
                  %v356 = vld [vmem:[%s334 + $0x50] sm:$0xf]
                  %357 = vst [vmem:[%s335 + $0x28] sm:$0xf] %v356
                  %v358 = vld [vmem:[%s334 + $0x58] sm:$0xf]
                  %359 = vst [vmem:[%s335 + $0x2c] sm:$0xf] %v358
                  %v360 = vld [vmem:[%s334 + $0x60] sm:$0xf]
                  %361 = vst [vmem:[%s335 + $0x30] sm:$0xf] %v360
                  %v362 = vld [vmem:[%s334 + $0x68] sm:$0xf]
                  %363 = vst [vmem:[%s335 + $0x34] sm:$0xf] %v362
                  %v364 = vld [vmem:[%s334 + $0x70] sm:$0xf]
                  %365 = vst [vmem:[%s335 + $0x38] sm:$0xf] %v364
                  %v366 = vld [vmem:[%s334 + $0x78] sm:$0xf]
                  %367 = vst [vmem:[%s335 + $0x3c] sm:$0xf] %v366
                  %v368 = vld [vmem:[%s334 + $0x80] sm:$0xf]
                  %369 = vst [vmem:[%s335 + $0x40] sm:$0xf] %v368
                  %v370 = vld [vmem:[%s334 + $0x88] sm:$0xf]
                  %371 = vst [vmem:[%s335 + $0x44] sm:$0xf] %v370
                  %v372 = vld [vmem:[%s334 + $0x90] sm:$0xf]
                  %373 = vst [vmem:[%s335 + $0x48] sm:$0xf] %v372
                  %v374 = vld [vmem:[%s334 + $0x98] sm:$0xf]
                  %375 = vst [vmem:[%s335 + $0x4c] sm:$0xf] %v374
                  %v376 = vld [vmem:[%s334 + $0xa0] sm:$0xf]
                  %377 = vst [vmem:[%s335 + $0x50] sm:$0xf] %v376
                  %v378 = vld [vmem:[%s334 + $0xa8] sm:$0xf]
                  %379 = vst [vmem:[%s335 + $0x54] sm:$0xf] %v378
                  %v380 = vld [vmem:[%s334 + $0xb0] sm:$0xf]
                  %381 = vst [vmem:[%s335 + $0x58] sm:$0xf] %v380
                  %v382 = vld [vmem:[%s334 + $0xb8] sm:$0xf]
                  %383 = vst [vmem:[%s335 + $0x5c] sm:$0xf] %v382
                  %v384 = vld [vmem:[%s334 + $0xc0] sm:$0xf]
                  %385 = vst [vmem:[%s335 + $0x60] sm:$0xf] %v384
                  %v386 = vld [vmem:[%s334 + $0xc8] sm:$0xf]
                  %387 = vst [vmem:[%s335 + $0x64] sm:$0xf] %v386
                  %v388 = vld [vmem:[%s334 + $0xd0] sm:$0xf]
                  %389 = vst [vmem:[%s335 + $0x68] sm:$0xf] %v388
                  %v390 = vld [vmem:[%s334 + $0xd8] sm:$0xf]
                  %391 = vst [vmem:[%s335 + $0x6c] sm:$0xf] %v390
                  %v392 = vld [vmem:[%s334 + $0xe0] sm:$0xf]
                  %393 = vst [vmem:[%s335 + $0x70] sm:$0xf] %v392
                  %v394 = vld [vmem:[%s334 + $0xe8] sm:$0xf]
                  %395 = vst [vmem:[%s335 + $0x74] sm:$0xf] %v394
                  %v396 = vld [vmem:[%s334 + $0xf0] sm:$0xf]
                  %397 = vst [vmem:[%s335 + $0x78] sm:$0xf] %v396
                  %v398 = vld [vmem:[%s334 + $0xf8] sm:$0xf]
                  %399 = vst [vmem:[%s335 + $0x7c] sm:$0xf] %v398
                  %v400 = vld [vmem:[%s334 + $0x100] sm:$0xf]
                  %401 = vst [vmem:[%s335 + $0x80] sm:$0xf] %v400
                  %v402 = vld [vmem:[%s334 + $0x108] sm:$0xf]
                  %403 = vst [vmem:[%s335 + $0x84] sm:$0xf] %v402
                  %v404 = vld [vmem:[%s334 + $0x110] sm:$0xf]
                  %405 = vst [vmem:[%s335 + $0x88] sm:$0xf] %v404
                  %v406 = vld [vmem:[%s334 + $0x118] sm:$0xf]
                  %407 = vst [vmem:[%s335 + $0x8c] sm:$0xf] %v406
                  %v408 = vld [vmem:[%s334 + $0x120] sm:$0xf]
                  %409 = vst [vmem:[%s335 + $0x90] sm:$0xf] %v408
                  %v410 = vld [vmem:[%s334 + $0x128] sm:$0xf]
                  %411 = vst [vmem:[%s335 + $0x94] sm:$0xf] %v410
                  %v412 = vld [vmem:[%s334 + $0x130] sm:$0xf]
                  %413 = vst [vmem:[%s335 + $0x98] sm:$0xf] %v412
                  %v414 = vld [vmem:[%s334 + $0x138] sm:$0xf]
                  %415 = vst [vmem:[%s335 + $0x9c] sm:$0xf] %v414
                  %v416 = vld [vmem:[%s334 + $0x140] sm:$0xf]
                  %417 = vst [vmem:[%s335 + $0xa0] sm:$0xf] %v416
                $region63: #{tpu_custom_call.1} parent=50 // loop_footer
                  %s333 = sadd.s32 1, %s329
                $region64: #{tpu_custom_call.1} parent=50 // loop_footer_branch
                  %328 = sbr.rel target = $region60
                $region65: #{tpu_custom_call.1} parent=50 // loop_exit
                  _
              $region51: #{tpu_custom_call.1} parent=35 // pred_fallthru
                _
            $region36: #{tpu_custom_call.1} parent=31 // pred_fallthru
              _
            // Predicated region
            $region37: #{tpu_custom_call.1} parent=31 // pred_check
              _
            $region38: #{tpu_custom_call.1} parent=31 // pred_check_branch
              %225 = sbr.rel (0) target = $region40
            $region39: #{tpu_custom_call.1} parent=31 // pred_region
              loop: start=0, step=1, limit=1
              $region41: #{tpu_custom_call.1} parent=39 // loop_pre_header
                _
              $region42: #{tpu_custom_call.1} parent=39 // loop_header
                %s228 = sphi 0, %s232
                %p229 = scmp.ge.s32.totalorder %s228, 1
                %s233 = sphi %s219, %s219
                %s234 = sphi %s215, %s215
              $region43: #{tpu_custom_call.1} parent=39 // loop_header_branch
                %231 = sbr.rel (%p229) target = $region47
              $region44: #{tpu_custom_call.1} parent=39 // loop_body
                %v235 = vld [vmem:[%s233] sm:$0xf]
                %236 = vst [vmem:[%s234] sm:$0xf] %v235
                %v237 = vld [vmem:[%s233 + $0x8] sm:$0xf]
                %238 = vst [vmem:[%s234 + $0x4] sm:$0xf] %v237
                %v239 = vld [vmem:[%s233 + $0x10] sm:$0xf]
                %240 = vst [vmem:[%s234 + $0x8] sm:$0xf] %v239
                %v241 = vld [vmem:[%s233 + $0x18] sm:$0xf]
                %242 = vst [vmem:[%s234 + $0xc] sm:$0xf] %v241
                %v243 = vld [vmem:[%s233 + $0x20] sm:$0xf]
                %244 = vst [vmem:[%s234 + $0x10] sm:$0xf] %v243
                %v245 = vld [vmem:[%s233 + $0x28] sm:$0xf]
                %246 = vst [vmem:[%s234 + $0x14] sm:$0xf] %v245
                %v247 = vld [vmem:[%s233 + $0x30] sm:$0xf]
                %248 = vst [vmem:[%s234 + $0x18] sm:$0xf] %v247
                %v249 = vld [vmem:[%s233 + $0x38] sm:$0xf]
                %250 = vst [vmem:[%s234 + $0x1c] sm:$0xf] %v249
                %v251 = vld [vmem:[%s233 + $0x40] sm:$0xf]
                %252 = vst [vmem:[%s234 + $0x20] sm:$0xf] %v251
                %v253 = vld [vmem:[%s233 + $0x48] sm:$0xf]
                %254 = vst [vmem:[%s234 + $0x24] sm:$0xf] %v253
                %v255 = vld [vmem:[%s233 + $0x50] sm:$0xf]
                %256 = vst [vmem:[%s234 + $0x28] sm:$0xf] %v255
                %v257 = vld [vmem:[%s233 + $0x58] sm:$0xf]
                %258 = vst [vmem:[%s234 + $0x2c] sm:$0xf] %v257
                %v259 = vld [vmem:[%s233 + $0x60] sm:$0xf]
                %260 = vst [vmem:[%s234 + $0x30] sm:$0xf] %v259
                %v261 = vld [vmem:[%s233 + $0x68] sm:$0xf]
                %262 = vst [vmem:[%s234 + $0x34] sm:$0xf] %v261
                %v263 = vld [vmem:[%s233 + $0x70] sm:$0xf]
                %264 = vst [vmem:[%s234 + $0x38] sm:$0xf] %v263
                %v265 = vld [vmem:[%s233 + $0x78] sm:$0xf]
                %266 = vst [vmem:[%s234 + $0x3c] sm:$0xf] %v265
                %v267 = vld [vmem:[%s233 + $0x80] sm:$0xf]
                %268 = vst [vmem:[%s234 + $0x40] sm:$0xf] %v267
                %v269 = vld [vmem:[%s233 + $0x88] sm:$0xf]
                %270 = vst [vmem:[%s234 + $0x44] sm:$0xf] %v269
                %v271 = vld [vmem:[%s233 + $0x90] sm:$0xf]
                %272 = vst [vmem:[%s234 + $0x48] sm:$0xf] %v271
                %v273 = vld [vmem:[%s233 + $0x98] sm:$0xf]
                %274 = vst [vmem:[%s234 + $0x4c] sm:$0xf] %v273
                %v275 = vld [vmem:[%s233 + $0xa0] sm:$0xf]
                %276 = vst [vmem:[%s234 + $0x50] sm:$0xf] %v275
                %v277 = vld [vmem:[%s233 + $0xa8] sm:$0xf]
                %278 = vst [vmem:[%s234 + $0x54] sm:$0xf] %v277
                %v279 = vld [vmem:[%s233 + $0xb0] sm:$0xf]
                %280 = vst [vmem:[%s234 + $0x58] sm:$0xf] %v279
                %v281 = vld [vmem:[%s233 + $0xb8] sm:$0xf]
                %282 = vst [vmem:[%s234 + $0x5c] sm:$0xf] %v281
                %v283 = vld [vmem:[%s233 + $0xc0] sm:$0xf]
                %284 = vst [vmem:[%s234 + $0x60] sm:$0xf] %v283
                %v285 = vld [vmem:[%s233 + $0xc8] sm:$0xf]
                %286 = vst [vmem:[%s234 + $0x64] sm:$0xf] %v285
                %v287 = vld [vmem:[%s233 + $0xd0] sm:$0xf]
                %288 = vst [vmem:[%s234 + $0x68] sm:$0xf] %v287
                %v289 = vld [vmem:[%s233 + $0xd8] sm:$0xf]
                %290 = vst [vmem:[%s234 + $0x6c] sm:$0xf] %v289
                %v291 = vld [vmem:[%s233 + $0xe0] sm:$0xf]
                %292 = vst [vmem:[%s234 + $0x70] sm:$0xf] %v291
                %v293 = vld [vmem:[%s233 + $0xe8] sm:$0xf]
                %294 = vst [vmem:[%s234 + $0x74] sm:$0xf] %v293
                %v295 = vld [vmem:[%s233 + $0xf0] sm:$0xf]
                %296 = vst [vmem:[%s234 + $0x78] sm:$0xf] %v295
                %v297 = vld [vmem:[%s233 + $0xf8] sm:$0xf]
                %298 = vst [vmem:[%s234 + $0x7c] sm:$0xf] %v297
                %v299 = vld [vmem:[%s233 + $0x100] sm:$0xf]
                %300 = vst [vmem:[%s234 + $0x80] sm:$0xf] %v299
                %v301 = vld [vmem:[%s233 + $0x108] sm:$0xf]
                %302 = vst [vmem:[%s234 + $0x84] sm:$0xf] %v301
                %v303 = vld [vmem:[%s233 + $0x110] sm:$0xf]
                %304 = vst [vmem:[%s234 + $0x88] sm:$0xf] %v303
                %v305 = vld [vmem:[%s233 + $0x118] sm:$0xf]
                %306 = vst [vmem:[%s234 + $0x8c] sm:$0xf] %v305
                %v307 = vld [vmem:[%s233 + $0x120] sm:$0xf]
                %308 = vst [vmem:[%s234 + $0x90] sm:$0xf] %v307
                %v309 = vld [vmem:[%s233 + $0x128] sm:$0xf]
                %310 = vst [vmem:[%s234 + $0x94] sm:$0xf] %v309
                %v311 = vld [vmem:[%s233 + $0x130] sm:$0xf]
                %312 = vst [vmem:[%s234 + $0x98] sm:$0xf] %v311
                %v313 = vld [vmem:[%s233 + $0x138] sm:$0xf]
                %314 = vst [vmem:[%s234 + $0x9c] sm:$0xf] %v313
                %v315 = vld [vmem:[%s233 + $0x140] sm:$0xf]
                %316 = vst [vmem:[%s234 + $0xa0] sm:$0xf] %v315
              $region45: #{tpu_custom_call.1} parent=39 // loop_footer
                %s232 = sadd.s32 1, %s228
              $region46: #{tpu_custom_call.1} parent=39 // loop_footer_branch
                %227 = sbr.rel target = $region42
              $region47: #{tpu_custom_call.1} parent=39 // loop_exit
                _
            $region40: #{tpu_custom_call.1} parent=31 // pred_fallthru
              _
          $region32: #{tpu_custom_call.1} parent=27 // pred_fallthru
            _
          %418 = vnop
        $region28: #{tpu_custom_call.1} parent=23 // pred_fallthru
          _
        // Predicated region
        $region66: #{tpu_custom_call.1} parent=23 // pred_check
          %p419 = pneg %p122
        $region67: #{tpu_custom_call.1} parent=23 // pred_check_branch
          %421 = sbr.rel (%p419) target = $region69
        $region68: #{tpu_custom_call.1} parent=23 // pred_region
          %s422 = sand.u32 %s112, 1
          %s423 = sand.u32 %s112, 1
          %s424 = smul.addr %s423, 32
          %s425 = scalar_lea.vmem [#allocation3], %s424
          %s426 = smul.addr %s25, 8
          %s427 = sadd.s32 %s26, %s426
          %s428 = smul.addr %s427, 8
          %s429 = scalar_lea.vmem %s3, %s428
          // Predicated region
          $region70: #{tpu_custom_call.1} parent=68 // pred_check
            _
          $region71: #{tpu_custom_call.1} parent=68 // pred_check_branch
            %431 = sbr.rel (0) target = $region73
          $region72: #{tpu_custom_call.1} parent=68 // pred_region
            // Predicated region
            $region74: #{tpu_custom_call.1} parent=72 // pred_check
              _
            $region75: #{tpu_custom_call.1} parent=72 // pred_check_branch
              %433 = sbr.rel (0) target = $region77
            $region76: #{tpu_custom_call.1} parent=72 // pred_region
              // Predicated region
              $region89: #{tpu_custom_call.1} parent=76 // pred_check
                _
              $region90: #{tpu_custom_call.1} parent=76 // pred_check_branch
                %454 = sbr.rel (0) target = $region92
              $region91: #{tpu_custom_call.1} parent=76 // pred_region
                loop: start=0, step=1, limit=1
                $region93: #{tpu_custom_call.1} parent=91 // loop_pre_header
                  _
                $region94: #{tpu_custom_call.1} parent=91 // loop_header
                  %s456 = sphi 0, %s460
                  %p457 = scmp.ge.s32.totalorder %s456, 1
                  %s461 = sphi %s429, %s429
                  %s462 = sphi %s425, %s425
                $region95: #{tpu_custom_call.1} parent=91 // loop_header_branch
                  %459 = sbr.rel (%p457) target = $region99
                $region96: #{tpu_custom_call.1} parent=91 // loop_body
                  %v463 = vld [vmem:[%s461] sm:$0xff]
                  %464 = vst [vmem:[%s462] sm:$0xff] %v463
                  %v465 = vld [vmem:[%s461 + $0x10] sm:$0xff]
                  %466 = vst [vmem:[%s462 + $0x8] sm:$0xff] %v465
                  %v467 = vld [vmem:[%s461 + $0x20] sm:$0xff]
                  %468 = vst [vmem:[%s462 + $0x10] sm:$0xff] %v467
                  %v469 = vld [vmem:[%s461 + $0x30] sm:$0xff]
                  %470 = vst [vmem:[%s462 + $0x18] sm:$0xff] %v469
                $region97: #{tpu_custom_call.1} parent=91 // loop_footer
                  %s460 = sadd.s32 1, %s456
                $region98: #{tpu_custom_call.1} parent=91 // loop_footer_branch
                  %455 = sbr.rel target = $region94
                $region99: #{tpu_custom_call.1} parent=91 // loop_exit
                  _
              $region92: #{tpu_custom_call.1} parent=76 // pred_fallthru
                _
              // Predicated region
              $region100: #{tpu_custom_call.1} parent=76 // pred_check
                _
              $region101: #{tpu_custom_call.1} parent=76 // pred_check_branch
                %472 = sbr.rel target = $region103
              $region102: #{tpu_custom_call.1} parent=76 // pred_region
                _
              $region103: #{tpu_custom_call.1} parent=76 // pred_fallthru
                _
            $region77: #{tpu_custom_call.1} parent=72 // pred_fallthru
              _
            // Predicated region
            $region78: #{tpu_custom_call.1} parent=72 // pred_check
              _
            $region79: #{tpu_custom_call.1} parent=72 // pred_check_branch
              %435 = sbr.rel target = $region81
            $region80: #{tpu_custom_call.1} parent=72 // pred_region
              loop: start=0, step=1, limit=1
              $region82: #{tpu_custom_call.1} parent=80 // loop_pre_header
                _
              $region83: #{tpu_custom_call.1} parent=80 // loop_header
                %s438 = sphi 0, %s442
                %p439 = scmp.ge.s32.totalorder %s438, 1
                %s443 = sphi %s429, %s429
                %s444 = sphi %s425, %s425
              $region84: #{tpu_custom_call.1} parent=80 // loop_header_branch
                %441 = sbr.rel (%p439) target = $region88
              $region85: #{tpu_custom_call.1} parent=80 // loop_body
                %v445 = vld [vmem:[%s443] sm:$0xff]
                %446 = vst [vmem:[%s444] sm:$0xff] %v445
                %v447 = vld [vmem:[%s443 + $0x10] sm:$0xff]
                %448 = vst [vmem:[%s444 + $0x8] sm:$0xff] %v447
                %v449 = vld [vmem:[%s443 + $0x20] sm:$0xff]
                %450 = vst [vmem:[%s444 + $0x10] sm:$0xff] %v449
                %v451 = vld [vmem:[%s443 + $0x30] sm:$0xff]
                %452 = vst [vmem:[%s444 + $0x18] sm:$0xff] %v451
              $region86: #{tpu_custom_call.1} parent=80 // loop_footer
                %s442 = sadd.s32 1, %s438
              $region87: #{tpu_custom_call.1} parent=80 // loop_footer_branch
                %437 = sbr.rel target = $region83
              $region88: #{tpu_custom_call.1} parent=80 // loop_exit
                _
            $region81: #{tpu_custom_call.1} parent=72 // pred_fallthru
              _
          $region73: #{tpu_custom_call.1} parent=68 // pred_fallthru
            _
          %473 = vnop
        $region69: #{tpu_custom_call.1} parent=23 // pred_fallthru
          _
      $region24: #{tpu_custom_call.1} parent=5 // pred_fallthru
        _
      %p474 = scmp.le.s32.totalorder 1, %s18
      %p475 = scmp.lt.s32.totalorder %s18, 5
      %p476 = pnand %p474, %p475
      %p477 = pneg %p476
      // Predicated region
      $region104: #{tpu_custom_call.1} parent=5 // pred_check
        _
      $region105: #{tpu_custom_call.1} parent=5 // pred_check_branch
        %479 = sbr.rel (%p476) target = $region107
      $region106: #{tpu_custom_call.1} parent=5 // pred_region
        %s480 = ssub.s32 %s18, 1
        %s481 = sand.u32 %s45, 1
        %s482 = sand.u32 %s45, 1
        %s483 = smul.addr %s482, 164
        %s484 = scalar_lea.vmem [#allocation2], %s483
        // Predicated region
        $region108: #{tpu_custom_call.1} parent=106 // pred_check
          %p485 = pneg %p58
        $region109: #{tpu_custom_call.1} parent=106 // pred_check_branch
          %487 = sbr.rel (%p485) target = $region111
        $region110: #{tpu_custom_call.1} parent=106 // pred_region
          _
        $region111: #{tpu_custom_call.1} parent=106 // pred_fallthru
          _
        %s488 = sand.u32 %s115, 1
        %s489 = sand.u32 %s115, 1
        %s490 = smul.addr %s489, 32
        %s491 = scalar_lea.vmem [#allocation3], %s490
        // Predicated region
        $region112: #{tpu_custom_call.1} parent=106 // pred_check
          %p492 = pneg %p128
        $region113: #{tpu_custom_call.1} parent=106 // pred_check_branch
          %494 = sbr.rel (%p492) target = $region115
        $region114: #{tpu_custom_call.1} parent=106 // pred_region
          _
        $region115: #{tpu_custom_call.1} parent=106 // pred_fallthru
          _
        %s495 = sand.u32 %s45, 1
        %s496 = sand.u32 %s45, 1
        %s497 = smul.addr %s496, 164
        %s498 = scalar_lea.vmem [#allocation2], %s497
        %p499 = pneg %p58
        %p500 = pneg %p55
        %p501 = pneg %p79
        %p502 = pneg %p76
        %p503 = pneg %p100
        %p504 = pneg %p97
        %s505 = sand.u32 %s115, 1
        %s506 = sand.u32 %s115, 1
        %s507 = smul.addr %s506, 32
        %s508 = scalar_lea.vmem [#allocation3], %s507
        %p509 = pneg %p128
        %p510 = pneg %p125
        %p511 = pneg %p156
        %p512 = pneg %p153
        %s513 = sand.u32 %s143, 1
        %s514 = scalar_lea.sflag [#allocation5], %s513
        %s515 = sand.u32 %s143, 1
        %s516 = smul.addr %s515, 32
        %s517 = scalar_lea.vmem [#allocation4], %s516
        %p518 = pneg %p184
        %p519 = pneg %p181
        %s520 = sand.u32 %s171, 1
        %s521 = scalar_lea.sflag [#allocation7], %s520
        %s522 = sand.u32 %s171, 1
        %s523 = smul.addr %s522, 32
        %s524 = scalar_lea.vmem [#allocation6], %s523
        %v526 = vld [vmem:[%s1] sm:$0xff]
        %v527 = vld [vmem:[%s1 + $0x8] sm:$0xf]
        %v528 = vld [vmem:[%s1 + $0xc] sm:$0xff]
        %v529 = vld [vmem:[%s1 + $0x14] sm:$0xf]
        %v530 = vld [vmem:[%s1 + $0x18] sm:$0xff]
        %v531 = vld [vmem:[%s1 + $0x20] sm:$0xf]
        %v532 = vld [vmem:[%s1 + $0x24] sm:$0xff]
        %v533 = vld [vmem:[%s1 + $0x2c] sm:$0xf]
        %v534 = vld [vmem:[%s1 + $0x30] sm:$0xff]
        %v535 = vld [vmem:[%s1 + $0x38] sm:$0xf]
        %v536 = vld [vmem:[%s1 + $0x3c] sm:$0xff]
        %v537 = vld [vmem:[%s1 + $0x44] sm:$0xf]
        %v538 = vld [vmem:[%s1 + $0x48] sm:$0xff]
        %v539 = vld [vmem:[%s1 + $0x50] sm:$0xf]
        %v540 = vld [vmem:[%s1 + $0x54] sm:$0xff]
        %v541 = vld [vmem:[%s1 + $0x5c] sm:$0xf]
        %v542 = vld [vmem:[%s1 + $0x60] sm:$0xff]
        %v543 = vld [vmem:[%s1 + $0x68] sm:$0xf]
        %v544 = vld [vmem:[%s1 + $0x6c] sm:$0xff]
        %v545 = vld [vmem:[%s1 + $0x74] sm:$0xf]
        %v546 = vld [vmem:[%s1 + $0x78] sm:$0xff]
        %v547 = vld [vmem:[%s1 + $0x80] sm:$0xf]
        %v548 = vld [vmem:[%s1 + $0x84] sm:$0xff]
        %v549 = vld [vmem:[%s1 + $0x8c] sm:$0xf]
        %v550 = vld [vmem:[%s1 + $0x90] sm:$0xff]
        %v551 = vld [vmem:[%s1 + $0x98] sm:$0xf]
        %v552 = vld [vmem:[%s1 + $0x9c] sm:$0xff]
        %v553 = vld [vmem:[%s1 + $0xa4] sm:$0xf]
        %v554 = vld [vmem:[%s1 + $0xa8] sm:$0xff]
        %v555 = vld [vmem:[%s1 + $0xb0] sm:$0xf]
        %v556 = vld [vmem:[%s1 + $0xb4] sm:$0xff]
        %v557 = vld [vmem:[%s1 + $0xbc] sm:$0xf]
        %v558 = vld [vmem:[%s484] sm:$0xf]
        %v559 = vld [vmem:[%s484 + $0x4] sm:$0xf]
        %v560 = vld [vmem:[%s484 + $0x8] sm:$0xf]
        %v561 = vld [vmem:[%s484 + $0xc] sm:$0xf]
        %v562 = vld [vmem:[%s484 + $0x10] sm:$0xf]
        %v563 = vld [vmem:[%s484 + $0x14] sm:$0xf]
        %v564 = vld [vmem:[%s484 + $0x18] sm:$0xf]
        %v565 = vld [vmem:[%s484 + $0x1c] sm:$0xf]
        %v566 = vld [vmem:[%s484 + $0x20] sm:$0xf]
        %v567 = vld [vmem:[%s484 + $0x24] sm:$0xf]
        %v568 = vld [vmem:[%s484 + $0x28] sm:$0xf]
        %v569 = vld [vmem:[%s484 + $0x2c] sm:$0xf]
        %v570 = vld [vmem:[%s484 + $0x30] sm:$0xf]
        %v571 = vld [vmem:[%s484 + $0x34] sm:$0xf]
        %v572 = vld [vmem:[%s484 + $0x38] sm:$0xf]
        %v573 = vld [vmem:[%s484 + $0x3c] sm:$0xf]
        %v574 = vld [vmem:[%s484 + $0x40] sm:$0xf]
        %v575 = vld [vmem:[%s484 + $0x44] sm:$0xf]
        %v576 = vld [vmem:[%s484 + $0x48] sm:$0xf]
        %v577 = vld [vmem:[%s484 + $0x4c] sm:$0xf]
        %v578 = vld [vmem:[%s484 + $0x50] sm:$0xf]
        %v579 = vld [vmem:[%s484 + $0x54] sm:$0xf]
        %v580 = vld [vmem:[%s484 + $0x58] sm:$0xf]
        %v581 = vld [vmem:[%s484 + $0x5c] sm:$0xf]
        %v582 = vld [vmem:[%s484 + $0x60] sm:$0xf]
        %v583 = vld [vmem:[%s484 + $0x64] sm:$0xf]
        %v584 = vld [vmem:[%s484 + $0x68] sm:$0xf]
        %v585 = vld [vmem:[%s484 + $0x6c] sm:$0xf]
        %v586 = vld [vmem:[%s484 + $0x70] sm:$0xf]
        %v587 = vld [vmem:[%s484 + $0x74] sm:$0xf]
        %v588 = vld [vmem:[%s484 + $0x78] sm:$0xf]
        %v589 = vld [vmem:[%s484 + $0x7c] sm:$0xf]
        %v590 = vld [vmem:[%s484 + $0x80] sm:$0xf]
        %v591 = vld [vmem:[%s484 + $0x84] sm:$0xf]
        %v592 = vld [vmem:[%s484 + $0x88] sm:$0xf]
        %v593 = vld [vmem:[%s484 + $0x8c] sm:$0xf]
        %v594 = vld [vmem:[%s484 + $0x90] sm:$0xf]
        %v595 = vld [vmem:[%s484 + $0x94] sm:$0xf]
        %v596 = vld [vmem:[%s484 + $0x98] sm:$0xf]
        %v597 = vld [vmem:[%s484 + $0x9c] sm:$0xf]
        %v598 = vld [vmem:[%s484 + $0xa0] sm:$0x3]
        %v599 = vld [vmem:[%s2] sm:$0xff]
        %v600 = vld [vmem:[%s2 + $0x8] sm:$0xff]
        %v601 = vld [vmem:[%s2 + $0x10] sm:$0xff]
        %v602 = vld [vmem:[%s2 + $0x18] sm:$0xff]
        %v603 = vld [vmem:[%s2 + $0x20] sm:$0xff]
        %v604 = vld [vmem:[%s2 + $0x28] sm:$0xff]
        %v605 = vld [vmem:[%s2 + $0x30] sm:$0xff]
        %v606 = vld [vmem:[%s2 + $0x38] sm:$0xff]
        %v607 = vld [vmem:[%s2 + $0x40] sm:$0xff]
        %v608 = vld [vmem:[%s2 + $0x48] sm:$0xff]
        %v609 = vld [vmem:[%s2 + $0x50] sm:$0xff]
        %v610 = vld [vmem:[%s2 + $0x58] sm:$0xff]
        %v611 = vld [vmem:[%s2 + $0x60] sm:$0xff]
        %v612 = vld [vmem:[%s2 + $0x68] sm:$0xff]
        %v613 = vld [vmem:[%s2 + $0x70] sm:$0xff]
        %v614 = vld [vmem:[%s2 + $0x78] sm:$0xff]
        %616 = vset.pattern.permute.xlu0 0
        %617 = vperm.xlu0 %616, %v599
        %v618 = vpop.permute.xlu0 %617
        %621 = vset.pattern.permute.xlu0 0
        %622 = vperm.xlu0 %621, %v600
        %v623 = vpop.permute.xlu0 %622
        %626 = vset.pattern.permute.xlu0 0
        %627 = vperm.xlu0 %626, %v601
        %v628 = vpop.permute.xlu0 %627
        %631 = vset.pattern.permute.xlu0 0
        %632 = vperm.xlu0 %631, %v602
        %v633 = vpop.permute.xlu0 %632
        %636 = vset.pattern.permute.xlu0 0
        %637 = vperm.xlu0 %636, %v603
        %v638 = vpop.permute.xlu0 %637
        %641 = vset.pattern.permute.xlu0 0
        %642 = vperm.xlu0 %641, %v604
        %v643 = vpop.permute.xlu0 %642
        %646 = vset.pattern.permute.xlu0 0
        %647 = vperm.xlu0 %646, %v605
        %v648 = vpop.permute.xlu0 %647
        %651 = vset.pattern.permute.xlu0 0
        %652 = vperm.xlu0 %651, %v606
        %v653 = vpop.permute.xlu0 %652
        %656 = vset.pattern.permute.xlu0 0
        %657 = vperm.xlu0 %656, %v607
        %v658 = vpop.permute.xlu0 %657
        %661 = vset.pattern.permute.xlu0 0
        %662 = vperm.xlu0 %661, %v608
        %v663 = vpop.permute.xlu0 %662
        %666 = vset.pattern.permute.xlu0 0
        %667 = vperm.xlu0 %666, %v609
        %v668 = vpop.permute.xlu0 %667
        %671 = vset.pattern.permute.xlu0 0
        %672 = vperm.xlu0 %671, %v610
        %v673 = vpop.permute.xlu0 %672
        %676 = vset.pattern.permute.xlu0 0
        %677 = vperm.xlu0 %676, %v611
        %v678 = vpop.permute.xlu0 %677
        %681 = vset.pattern.permute.xlu0 0
        %682 = vperm.xlu0 %681, %v612
        %v683 = vpop.permute.xlu0 %682
        %686 = vset.pattern.permute.xlu0 0
        %687 = vperm.xlu0 %686, %v613
        %v688 = vpop.permute.xlu0 %687
        %691 = vset.pattern.permute.xlu0 0
        %692 = vperm.xlu0 %691, %v614
        %v693 = vpop.permute.xlu0 %692
        %v727 = vunpack.c.l.b16 %v526
        %v728 = vunpack.c.h.b16 %v526
        %v729 = vunpack.c.l.b16 %v527
        %v730 = vunpack.c.l.b16 %v528
        %v731 = vunpack.c.h.b16 %v528
        %v732 = vunpack.c.l.b16 %v529
        %v733 = vunpack.c.l.b16 %v530
        %v734 = vunpack.c.h.b16 %v530
        %v735 = vunpack.c.l.b16 %v531
        %v736 = vunpack.c.l.b16 %v532
        %v737 = vunpack.c.h.b16 %v532
        %v738 = vunpack.c.l.b16 %v533
        %v739 = vunpack.c.l.b16 %v534
        %v740 = vunpack.c.h.b16 %v534
        %v741 = vunpack.c.l.b16 %v535
        %v742 = vunpack.c.l.b16 %v536
        %v743 = vunpack.c.h.b16 %v536
        %v744 = vunpack.c.l.b16 %v537
        %v745 = vunpack.c.l.b16 %v538
        %v746 = vunpack.c.h.b16 %v538
        %v747 = vunpack.c.l.b16 %v539
        %v748 = vunpack.c.l.b16 %v540
        %v749 = vunpack.c.h.b16 %v540
        %v750 = vunpack.c.l.b16 %v541
        %v751 = vunpack.c.l.b16 %v542
        %v752 = vunpack.c.h.b16 %v542
        %v753 = vunpack.c.l.b16 %v543
        %v754 = vunpack.c.l.b16 %v544
        %v755 = vunpack.c.h.b16 %v544
        %v756 = vunpack.c.l.b16 %v545
        %v757 = vunpack.c.l.b16 %v546
        %v758 = vunpack.c.h.b16 %v546
        %v759 = vunpack.c.l.b16 %v547
        %v760 = vunpack.c.l.b16 %v548
        %v761 = vunpack.c.h.b16 %v548
        %v762 = vunpack.c.l.b16 %v549
        %v763 = vunpack.c.l.b16 %v550
        %v764 = vunpack.c.h.b16 %v550
        %v765 = vunpack.c.l.b16 %v551
        %v766 = vunpack.c.l.b16 %v552
        %v767 = vunpack.c.h.b16 %v552
        %v768 = vunpack.c.l.b16 %v553
        %v769 = vunpack.c.l.b16 %v554
        %v770 = vunpack.c.h.b16 %v554
        %v771 = vunpack.c.l.b16 %v555
        %v772 = vunpack.c.l.b16 %v556
        %v773 = vunpack.c.h.b16 %v556
        %v774 = vunpack.c.l.b16 %v557
        %v775 = vpack.c.b16 %v730, %v727
        %v776 = vpack.c.b16 %v731, %v728
        %v777 = vpack.c.b16 %v732, %v729
        %v778 = vpack.c.b16 %v736, %v733
        %v779 = vpack.c.b16 %v737, %v734
        %v780 = vpack.c.b16 %v738, %v735
        %v781 = vpack.c.b16 %v742, %v739
        %v782 = vpack.c.b16 %v743, %v740
        %v783 = vpack.c.b16 %v744, %v741
        %v784 = vpack.c.b16 %v748, %v745
        %v785 = vpack.c.b16 %v749, %v746
        %v786 = vpack.c.b16 %v750, %v747
        %v787 = vpack.c.b16 %v754, %v751
        %v788 = vpack.c.b16 %v755, %v752
        %v789 = vpack.c.b16 %v756, %v753
        %v790 = vpack.c.b16 %v760, %v757
        %v791 = vpack.c.b16 %v761, %v758
        %v792 = vpack.c.b16 %v762, %v759
        %v793 = vpack.c.b16 %v766, %v763
        %v794 = vpack.c.b16 %v767, %v764
        %v795 = vpack.c.b16 %v768, %v765
        %v796 = vpack.c.b16 %v772, %v769
        %v797 = vpack.c.b16 %v773, %v770
        %v798 = vpack.c.b16 %v774, %v771
        %v856 = vunpack.c.l.b16 %v558
        %v857 = vunpack.c.l.b16 %v559
        %v858 = vunpack.c.l.b16 %v560
        %v859 = vunpack.c.l.b16 %v561
        %v860 = vunpack.c.l.b16 %v562
        %v861 = vunpack.c.l.b16 %v563
        %v862 = vunpack.c.l.b16 %v564
        %v863 = vunpack.c.l.b16 %v565
        %v864 = vunpack.c.l.b16 %v566
        %v865 = vunpack.c.l.b16 %v567
        %v866 = vunpack.c.l.b16 %v568
        %v867 = vunpack.c.l.b16 %v569
        %v868 = vunpack.c.l.b16 %v570
        %v869 = vunpack.c.l.b16 %v571
        %v870 = vunpack.c.l.b16 %v572
        %v871 = vunpack.c.l.b16 %v573
        %v872 = vunpack.c.l.b16 %v574
        %v873 = vunpack.c.l.b16 %v575
        %v874 = vunpack.c.l.b16 %v576
        %v875 = vunpack.c.l.b16 %v577
        %v876 = vunpack.c.l.b16 %v578
        %v877 = vunpack.c.l.b16 %v579
        %v878 = vunpack.c.l.b16 %v580
        %v879 = vunpack.c.l.b16 %v581
        %v880 = vunpack.c.l.b16 %v582
        %v881 = vunpack.c.l.b16 %v583
        %v882 = vunpack.c.l.b16 %v584
        %v883 = vunpack.c.l.b16 %v585
        %v884 = vunpack.c.l.b16 %v586
        %v885 = vunpack.c.l.b16 %v587
        %v886 = vunpack.c.l.b16 %v588
        %v887 = vunpack.c.l.b16 %v589
        %v888 = vunpack.c.l.b16 %v590
        %v889 = vunpack.c.l.b16 %v591
        %v890 = vunpack.c.l.b16 %v592
        %v891 = vunpack.c.l.b16 %v593
        %v892 = vunpack.c.l.b16 %v594
        %v893 = vunpack.c.l.b16 %v595
        %v894 = vunpack.c.l.b16 %v596
        %v895 = vunpack.c.l.b16 %v597
        %v896 = vunpack.c.l.b16 %v598
        %v897 = vpack.c.b16 %v857, %v856
        %v898 = vpack.c.b16 %v859, %v858
        %v899 = vpack.c.b16 %v861, %v860
        %v900 = vpack.c.b16 %v863, %v862
        %v901 = vpack.c.b16 %v865, %v864
        %v902 = vpack.c.b16 %v867, %v866
        %v903 = vpack.c.b16 %v869, %v868
        %v904 = vpack.c.b16 %v871, %v870
        %v905 = vpack.c.b16 %v873, %v872
        %v906 = vpack.c.b16 %v875, %v874
        %v907 = vpack.c.b16 %v877, %v876
        %v908 = vpack.c.b16 %v879, %v878
        %v909 = vpack.c.b16 %v881, %v880
        %v910 = vpack.c.b16 %v883, %v882
        %v911 = vpack.c.b16 %v885, %v884
        %v912 = vpack.c.b16 %v887, %v886
        %v913 = vpack.c.b16 %v889, %v888
        %v914 = vpack.c.b16 %v891, %v890
        %v915 = vpack.c.b16 %v893, %v892
        %v916 = vpack.c.b16 %v895, %v894
        %v917 = vpack.c.b16 %v896, %v896
        %vm938 = vcmask 556032
        %v940 = vsel %vm938, %v777, 0
        %v943 = vsel %vm938, %v780, 0
        %v946 = vsel %vm938, %v783, 0
        %v949 = vsel %vm938, %v786, 0
        %v952 = vsel %vm938, %v789, 0
        %v955 = vsel %vm938, %v792, 0
        %v958 = vsel %vm938, %v795, 0
        %v961 = vsel %vm938, %v798, 0
        %vm963 = vcmask 1041408
        %v965 = vsel %vm963, %v917, 0
        %967 = vmatprep.subr.bf16.mxu0 0
        %968 = vmatpush1.bf16.msra.mxu0 %v897
        %969 = vmatprep.subr.bf16.mxu0 0
        %970 = vmatpush1.bf16.msra.mxu0 %v898
        %971 = vmatprep.subr.bf16.mxu0 0
        %972 = vmatpush1.bf16.msra.mxu0 %v899
        %973 = vmatprep.subr.bf16.mxu0 0
        %974 = vmatpush1.bf16.msra.mxu0 %v900
        %975 = vmatprep.subr.bf16.mxu0 0
        %976 = vmatpush1.bf16.msra.mxu0 %v901
        %977 = vmatprep.subr.bf16.mxu0 0
        %978 = vmatpush1.bf16.msra.mxu0 %v902
        %979 = vmatprep.subr.bf16.mxu0 0
        %980 = vmatpush1.bf16.msra.mxu0 %v903
        %981 = vmatprep.subr.bf16.mxu0 0
        %982 = vmatpush1.bf16.msra.mxu0 %v904
        %983 = vmatprep.subr.bf16.mxu0 0
        %984 = vmatpush1.bf16.msra.mxu0 %v905
        %985 = vmatprep.subr.bf16.mxu0 0
        %986 = vmatpush1.bf16.msra.mxu0 %v906
        %987 = vmatprep.subr.bf16.mxu0 0
        %988 = vmatpush1.bf16.msra.mxu0 %v907
        %989 = vmatprep.subr.bf16.mxu0 0
        %990 = vmatpush1.bf16.msra.mxu0 %v908
        %991 = vmatprep.subr.bf16.mxu0 0
        %992 = vmatpush1.bf16.msra.mxu0 %v909
        %993 = vmatprep.subr.bf16.mxu0 0
        %994 = vmatpush1.bf16.msra.mxu0 %v910
        %995 = vmatprep.subr.bf16.mxu0 0
        %996 = vmatpush1.bf16.msra.mxu0 %v911
        %997 = vmatprep.subr.bf16.mxu0 0
        %998 = vmatpush1.bf16.msra.mxu0 %v912
        %999 = vmatprep.mubr.bf16.mxu0 %v776
        %1000 = vmatmul.mubr.bf16.gmra.mrb[0].mxu0 %v775
        %v1001 = vpop.f32.mrb[0].mxu0
        %v1002 = vadd.f32 %v618, %v1001
        %v1003 = vpop.f32.mrb[0].mxu0
        %v1004 = vpop.f32.mrb[0].mxu0
        %v1005 = vadd.f32 %v623, %v1004
        %v1006 = vpop.f32.mrb[0].mxu0
        %1007 = vmatprep.mubr.bf16.mxu0 %v779
        %1008 = vmatmul.mubr.bf16.gmra.mrb[0].mxu0 %v778
        %v1009 = vpop.f32.mrb[0].mxu0
        %v1010 = vadd.f32 %v628, %v1009
        %v1011 = vpop.f32.mrb[0].mxu0
        %v1012 = vpop.f32.mrb[0].mxu0
        %v1013 = vadd.f32 %v633, %v1012
        %v1014 = vpop.f32.mrb[0].mxu0
        %1015 = vmatprep.mubr.bf16.mxu0 %v782
        %1016 = vmatmul.mubr.bf16.gmra.mrb[0].mxu0 %v781
        %v1017 = vpop.f32.mrb[0].mxu0
        %v1018 = vadd.f32 %v638, %v1017
        %v1019 = vpop.f32.mrb[0].mxu0
        %v1020 = vpop.f32.mrb[0].mxu0
        %v1021 = vadd.f32 %v643, %v1020
        %v1022 = vpop.f32.mrb[0].mxu0
        %1023 = vmatprep.mubr.bf16.mxu0 %v785
        %1024 = vmatmul.mubr.bf16.gmra.mrb[0].mxu0 %v784
        %v1025 = vpop.f32.mrb[0].mxu0
        %v1026 = vadd.f32 %v648, %v1025
        %v1027 = vpop.f32.mrb[0].mxu0
        %v1028 = vpop.f32.mrb[0].mxu0
        %v1029 = vadd.f32 %v653, %v1028
        %v1030 = vpop.f32.mrb[0].mxu0
        %1031 = vmatprep.mubr.bf16.mxu0 %v788
        %1032 = vmatmul.mubr.bf16.gmra.mrb[0].mxu0 %v787
        %v1033 = vpop.f32.mrb[0].mxu0
        %v1034 = vadd.f32 %v658, %v1033
        %v1035 = vpop.f32.mrb[0].mxu0
        %v1036 = vpop.f32.mrb[0].mxu0
        %v1037 = vadd.f32 %v663, %v1036
        %v1038 = vpop.f32.mrb[0].mxu0
        %1039 = vmatprep.mubr.bf16.mxu0 %v791
        %1040 = vmatmul.mubr.bf16.gmra.mrb[0].mxu0 %v790
        %v1041 = vpop.f32.mrb[0].mxu0
        %v1042 = vadd.f32 %v668, %v1041
        %v1043 = vpop.f32.mrb[0].mxu0
        %v1044 = vpop.f32.mrb[0].mxu0
        %v1045 = vadd.f32 %v673, %v1044
        %v1046 = vpop.f32.mrb[0].mxu0
        %1047 = vmatprep.mubr.bf16.mxu0 %v794
        %1048 = vmatmul.mubr.bf16.gmra.mrb[0].mxu0 %v793
        %v1049 = vpop.f32.mrb[0].mxu0
        %v1050 = vadd.f32 %v678, %v1049
        %v1051 = vpop.f32.mrb[0].mxu0
        %v1052 = vpop.f32.mrb[0].mxu0
        %v1053 = vadd.f32 %v683, %v1052
        %v1054 = vpop.f32.mrb[0].mxu0
        %1055 = vmatprep.mubr.bf16.mxu0 %v797
        %1056 = vmatmul.mubr.bf16.gmra.mrb[0].mxu0 %v796
        %v1057 = vpop.f32.mrb[0].mxu0
        %v1058 = vadd.f32 %v688, %v1057
        %v1059 = vpop.f32.mrb[0].mxu0
        %v1060 = vpop.f32.mrb[0].mxu0
        %v1061 = vadd.f32 %v693, %v1060
        %v1062 = vpop.f32.mrb[0].mxu0
        %1063 = vdwg.mxu0
        %1064 = vmatprep.subr.bf16.mxu0 0
        %1065 = vmatpush1.bf16.msra.mxu0 %v913
        %1066 = vmatprep.subr.bf16.mxu0 0
        %1067 = vmatpush1.bf16.msra.mxu0 %v914
        %1068 = vmatprep.subr.bf16.mxu0 0
        %1069 = vmatpush1.bf16.msra.mxu0 %v915
        %1070 = vmatprep.subr.bf16.mxu0 0
        %1071 = vmatpush1.bf16.msra.mxu0 %v916
        %1072 = vmatprep.subr.bf16.mxu0 0
        %1073 = vmatpush1.bf16.msra.mxu0 %v965
        %1074 = vmatprep.subr.bf16.mxu0 0
        %1075 = vmatpush1.bf16.msra.mxu0 0
        %1076 = vmatprep.subr.bf16.mxu0 0
        %1077 = vmatpush1.bf16.msra.mxu0 0
        %1078 = vmatprep.subr.bf16.mxu0 0
        %1079 = vmatpush1.bf16.msra.mxu0 0
        %1080 = vmatprep.subr.bf16.mxu0 0
        %1081 = vmatpush1.bf16.msra.mxu0 0
        %1082 = vmatprep.subr.bf16.mxu0 0
        %1083 = vmatpush1.bf16.msra.mxu0 0
        %1084 = vmatprep.subr.bf16.mxu0 0
        %1085 = vmatpush1.bf16.msra.mxu0 0
        %1086 = vmatprep.subr.bf16.mxu0 0
        %1087 = vmatpush1.bf16.msra.mxu0 0
        %1088 = vmatprep.subr.bf16.mxu0 0
        %1089 = vmatpush1.bf16.msra.mxu0 0
        %1090 = vmatprep.subr.bf16.mxu0 0
        %1091 = vmatpush1.bf16.msra.mxu0 0
        %1092 = vmatprep.subr.bf16.mxu0 0
        %1093 = vmatpush1.bf16.msra.mxu0 0
        %1094 = vmatprep.subr.bf16.mxu0 0
        %1095 = vmatpush1.bf16.msra.mxu0 0
        %1096 = vmatprep.mubr.bf16.mxu0 0
        %1097 = vmatmul.mubr.bf16.gmra.mrb[0].mxu0 %v940
        %v1098 = vpop.f32.mrb[0].mxu0
        %v1099 = vadd.f32 %v1002, %v1098
        %v1100 = vpop.f32.mrb[0].mxu0
        %v1101 = vpop.f32.mrb[0].mxu0
        %v1102 = vadd.f32 %v1005, %v1101
        %v1103 = vpop.f32.mrb[0].mxu0
        %1104 = vmatprep.mubr.bf16.mxu0 0
        %1105 = vmatmul.mubr.bf16.gmra.mrb[0].mxu0 %v943
        %v1106 = vpop.f32.mrb[0].mxu0
        %v1107 = vadd.f32 %v1010, %v1106
        %v1108 = vpop.f32.mrb[0].mxu0
        %v1109 = vpop.f32.mrb[0].mxu0
        %v1110 = vadd.f32 %v1013, %v1109
        %v1111 = vpop.f32.mrb[0].mxu0
        %1112 = vmatprep.mubr.bf16.mxu0 0
        %1113 = vmatmul.mubr.bf16.gmra.mrb[0].mxu0 %v946
        %v1114 = vpop.f32.mrb[0].mxu0
        %v1115 = vadd.f32 %v1018, %v1114
        %v1116 = vpop.f32.mrb[0].mxu0
        %v1117 = vpop.f32.mrb[0].mxu0
        %v1118 = vadd.f32 %v1021, %v1117
        %v1119 = vpop.f32.mrb[0].mxu0
        %1120 = vmatprep.mubr.bf16.mxu0 0
        %1121 = vmatmul.mubr.bf16.gmra.mrb[0].mxu0 %v949
        %v1122 = vpop.f32.mrb[0].mxu0
        %v1123 = vadd.f32 %v1026, %v1122
        %v1124 = vpop.f32.mrb[0].mxu0
        %v1125 = vpop.f32.mrb[0].mxu0
        %v1126 = vadd.f32 %v1029, %v1125
        %v1127 = vpop.f32.mrb[0].mxu0
        %1128 = vmatprep.mubr.bf16.mxu0 0
        %1129 = vmatmul.mubr.bf16.gmra.mrb[0].mxu0 %v952
        %v1130 = vpop.f32.mrb[0].mxu0
        %v1131 = vadd.f32 %v1034, %v1130
        %v1132 = vpop.f32.mrb[0].mxu0
        %v1133 = vpop.f32.mrb[0].mxu0
        %v1134 = vadd.f32 %v1037, %v1133
        %v1135 = vpop.f32.mrb[0].mxu0
        %1136 = vmatprep.mubr.bf16.mxu0 0
        %1137 = vmatmul.mubr.bf16.gmra.mrb[0].mxu0 %v955
        %v1138 = vpop.f32.mrb[0].mxu0
        %v1139 = vadd.f32 %v1042, %v1138
        %v1140 = vpop.f32.mrb[0].mxu0
        %v1141 = vpop.f32.mrb[0].mxu0
        %v1142 = vadd.f32 %v1045, %v1141
        %v1143 = vpop.f32.mrb[0].mxu0
        %1144 = vmatprep.mubr.bf16.mxu0 0
        %1145 = vmatmul.mubr.bf16.gmra.mrb[0].mxu0 %v958
        %v1146 = vpop.f32.mrb[0].mxu0
        %v1147 = vadd.f32 %v1050, %v1146
        %v1148 = vpop.f32.mrb[0].mxu0
        %v1149 = vpop.f32.mrb[0].mxu0
        %v1150 = vadd.f32 %v1053, %v1149
        %v1151 = vpop.f32.mrb[0].mxu0
        %1152 = vmatprep.mubr.bf16.mxu0 0
        %1153 = vmatmul.mubr.bf16.gmra.mrb[0].mxu0 %v961
        %v1154 = vpop.f32.mrb[0].mxu0
        %v1155 = vadd.f32 %v1058, %v1154
        %v1156 = vpop.f32.mrb[0].mxu0
        %v1157 = vpop.f32.mrb[0].mxu0
        %v1158 = vadd.f32 %v1061, %v1157
        %v1159 = vpop.f32.mrb[0].mxu0
        %1160 = vdwg.mxu0
        %v1161 = vxor.u32 %v1099, 2147483648
        %v1162 = vxor.u32 %v1102, 2147483648
        %v1163 = vxor.u32 %v1107, 2147483648
        %v1164 = vxor.u32 %v1110, 2147483648
        %v1165 = vmul.f32 %v1161, 1.442695
        %v1166 = vpow.pop %v1165
        %v1167 = vmul.f32 %v1162, 1.442695
        %v1168 = vpow.pop %v1167
        %v1169 = vmul.f32 %v1163, 1.442695
        %v1170 = vpow.pop %v1169
        %v1171 = vmul.f32 %v1164, 1.442695
        %v1172 = vpow.pop %v1171
        %v1173 = vadd.f32 %v1166, 1.0
        %v1174 = vadd.f32 %v1168, 1.0
        %v1175 = vadd.f32 %v1170, 1.0
        %v1176 = vadd.f32 %v1172, 1.0
        %v1177 = vrcp.pop %v1173
        %v1178 = vmul.f32 1.0, %v1177
        %v1179 = vrcp.pop %v1174
        %v1180 = vmul.f32 1.0, %v1179
        %v1181 = vrcp.pop %v1175
        %v1182 = vmul.f32 1.0, %v1181
        %v1183 = vrcp.pop %v1176
        %v1184 = vmul.f32 1.0, %v1183
        %v1185 = vxor.u32 %v1115, 2147483648
        %v1186 = vxor.u32 %v1118, 2147483648
        %v1187 = vxor.u32 %v1123, 2147483648
        %v1188 = vxor.u32 %v1126, 2147483648
        %v1189 = vmul.f32 %v1185, 1.442695
        %v1190 = vpow.pop %v1189
        %v1191 = vmul.f32 %v1186, 1.442695
        %v1192 = vpow.pop %v1191
        %v1193 = vmul.f32 %v1187, 1.442695
        %v1194 = vpow.pop %v1193
        %v1195 = vmul.f32 %v1188, 1.442695
        %v1196 = vpow.pop %v1195
        %v1197 = vadd.f32 %v1190, 1.0
        %v1198 = vadd.f32 %v1192, 1.0
        %v1199 = vadd.f32 %v1194, 1.0
        %v1200 = vadd.f32 %v1196, 1.0
        %v1201 = vrcp.pop %v1197
        %v1202 = vmul.f32 1.0, %v1201
        %v1203 = vrcp.pop %v1198
        %v1204 = vmul.f32 1.0, %v1203
        %v1205 = vrcp.pop %v1199
        %v1206 = vmul.f32 1.0, %v1205
        %v1207 = vrcp.pop %v1200
        %v1208 = vmul.f32 1.0, %v1207
        %v1209 = vxor.u32 %v1131, 2147483648
        %v1210 = vxor.u32 %v1134, 2147483648
        %v1211 = vxor.u32 %v1139, 2147483648
        %v1212 = vxor.u32 %v1142, 2147483648
        %v1213 = vmul.f32 %v1209, 1.442695
        %v1214 = vpow.pop %v1213
        %v1215 = vmul.f32 %v1210, 1.442695
        %v1216 = vpow.pop %v1215
        %v1217 = vmul.f32 %v1211, 1.442695
        %v1218 = vpow.pop %v1217
        %v1219 = vmul.f32 %v1212, 1.442695
        %v1220 = vpow.pop %v1219
        %v1221 = vadd.f32 %v1214, 1.0
        %v1222 = vadd.f32 %v1216, 1.0
        %v1223 = vadd.f32 %v1218, 1.0
        %v1224 = vadd.f32 %v1220, 1.0
        %v1225 = vrcp.pop %v1221
        %v1226 = vmul.f32 1.0, %v1225
        %v1227 = vrcp.pop %v1222
        %v1228 = vmul.f32 1.0, %v1227
        %v1229 = vrcp.pop %v1223
        %v1230 = vmul.f32 1.0, %v1229
        %v1231 = vrcp.pop %v1224
        %v1232 = vmul.f32 1.0, %v1231
        %v1233 = vtanh.pop %v1147
        %v1234 = vtanh.pop %v1150
        %v1235 = vtanh.pop %v1155
        %v1236 = vtanh.pop %v1158
        %v1237 = vld [vmem:[%s491] sm:$0xff]
        %v1238 = vld [vmem:[%s491 + $0x8] sm:$0xff]
        %v1239 = vld [vmem:[%s491 + $0x10] sm:$0xff]
        %v1240 = vld [vmem:[%s491 + $0x18] sm:$0xff]
        %v1241 = vmul.f32 %v1202, %v1237
        %v1242 = vmul.f32 %v1204, %v1238
        %v1243 = vmul.f32 %v1206, %v1239
        %v1244 = vmul.f32 %v1208, %v1240
        %v1245 = vmul.f32 %v1178, %v1233
        %v1246 = vmul.f32 %v1180, %v1234
        %v1247 = vmul.f32 %v1182, %v1235
        %v1248 = vmul.f32 %v1184, %v1236
        %v1249 = vadd.f32 %v1241, %v1245
        %v1250 = vadd.f32 %v1242, %v1246
        %v1251 = vadd.f32 %v1243, %v1247
        %v1252 = vadd.f32 %v1244, %v1248
        %v1253 = vtanh.pop %v1249
        %v1254 = vtanh.pop %v1250
        %v1255 = vtanh.pop %v1251
        %v1256 = vtanh.pop %v1252
        %v1257 = vmul.f32 %v1226, %v1253
        %v1258 = vmul.f32 %v1228, %v1254
        %v1259 = vmul.f32 %v1230, %v1255
        %v1260 = vmul.f32 %v1232, %v1256
        %1261 = vst [vmem:[%s524] sm:$0xff] %v1249
        %1262 = vst [vmem:[%s524 + $0x8] sm:$0xff] %v1250
        %1263 = vst [vmem:[%s524 + $0x10] sm:$0xff] %v1251
        %1264 = vst [vmem:[%s524 + $0x18] sm:$0xff] %v1252
        %1265 = vst [vmem:[%s517] sm:$0xff] %v1257
        %1266 = vst [vmem:[%s517 + $0x8] sm:$0xff] %v1258
        %1267 = vst [vmem:[%s517 + $0x10] sm:$0xff] %v1259
        %1268 = vst [vmem:[%s517 + $0x18] sm:$0xff] %v1260
        %s1269 = sand.u32 %s143, 1
        %s1270 = scalar_lea.sflag [#allocation5], %s1269
        %s1271 = sand.u32 %s143, 1
        %s1272 = smul.addr %s1271, 32
        %s1273 = scalar_lea.vmem [#allocation4], %s1272
        %s1274 = sand.u32 %s171, 1
        %s1275 = scalar_lea.sflag [#allocation7], %s1274
        %s1276 = sand.u32 %s171, 1
        %s1277 = smul.addr %s1276, 32
        %s1278 = scalar_lea.vmem [#allocation6], %s1277
        // Predicated region
        $region116: #{tpu_custom_call.1} parent=106 // pred_check
          %p1279 = pneg %p153
        $region117: #{tpu_custom_call.1} parent=106 // pred_check_branch
          %1281 = sbr.rel (%p1279) target = $region119
        $region118: #{tpu_custom_call.1} parent=106 // pred_region
          %s1283 = ssub.s32 512, 512
          %1284 = vsyncadd %s1270, %s1283
          %s1285 = smul.addr %s27, 8
          %s1286 = sadd.s32 %s28, %s1285
          %s1287 = smul.addr %s1286, 128
          %s1288 = scalar_lea.hbm %s4, %s1287
          %s1289 = sshll.u32 %s1273, 4
          %s1290 = int_to_ptr.vmem [resolvable:$true] %s1289
          %1295 = dma.vmem_to_hbm [thread:$0]  %s1290, 512, %s1288, %s1270, 128, 256, 8
        $region119: #{tpu_custom_call.1} parent=106 // pred_fallthru
          _
        // Predicated region
        $region120: #{tpu_custom_call.1} parent=106 // pred_check
          %p1296 = pneg %p181
        $region121: #{tpu_custom_call.1} parent=106 // pred_check_branch
          %1298 = sbr.rel (%p1296) target = $region123
        $region122: #{tpu_custom_call.1} parent=106 // pred_region
          %s1300 = ssub.s32 512, 512
          %1301 = vsyncadd %s1275, %s1300
          %s1302 = smul.addr %s27, 8
          %s1303 = sadd.s32 %s28, %s1302
          %s1304 = smul.addr %s1303, 128
          %s1305 = scalar_lea.hbm %s5, %s1304
          %s1306 = sshll.u32 %s1278, 4
          %s1307 = int_to_ptr.vmem [resolvable:$true] %s1306
          %1312 = dma.vmem_to_hbm [thread:$0]  %s1307, 512, %s1305, %s1275, 128, 256, 8
        $region123: #{tpu_custom_call.1} parent=106 // pred_fallthru
          _
      $region107: #{tpu_custom_call.1} parent=5 // pred_fallthru
        _
      %p1313 = scmp.le.s32.totalorder 2, %s18
      // Predicated region
      $region124: #{tpu_custom_call.1} parent=5 // pred_check
        %p1314 = pneg %p1313
      $region125: #{tpu_custom_call.1} parent=5 // pred_check_branch
        %1316 = sbr.rel (%p1314) target = $region127
      $region126: #{tpu_custom_call.1} parent=5 // pred_region
        %s1317 = ssub.s32 %s18, 2
        // Predicated region
        $region128: #{tpu_custom_call.1} parent=126 // pred_check
          %p1318 = pneg %p159
        $region129: #{tpu_custom_call.1} parent=126 // pred_check_branch
          %1320 = sbr.rel (%p1318) target = $region131
        $region130: #{tpu_custom_call.1} parent=126 // pred_region
          %s1321 = sand.u32 %s144, 1
          %s1322 = scalar_lea.sflag [#allocation5], %s1321
          %s1323 = sand.u32 %s144, 1
          %s1324 = smul.addr %s1323, 32
          %s1325 = scalar_lea.vmem [#allocation4], %s1324
          %1326 = dma.done %s1322, 512
        $region131: #{tpu_custom_call.1} parent=126 // pred_fallthru
          _
        // Predicated region
        $region132: #{tpu_custom_call.1} parent=126 // pred_check
          %p1327 = pneg %p187
        $region133: #{tpu_custom_call.1} parent=126 // pred_check_branch
          %1329 = sbr.rel (%p1327) target = $region135
        $region134: #{tpu_custom_call.1} parent=126 // pred_region
          %s1330 = sand.u32 %s172, 1
          %s1331 = scalar_lea.sflag [#allocation7], %s1330
          %s1332 = sand.u32 %s172, 1
          %s1333 = smul.addr %s1332, 32
          %s1334 = scalar_lea.vmem [#allocation6], %s1333
          %1335 = dma.done %s1331, 512
        $region135: #{tpu_custom_call.1} parent=126 // pred_fallthru
          _
      $region127: #{tpu_custom_call.1} parent=5 // pred_fallthru
        _
    $region6: #{tpu_custom_call.1} parent=1 // loop_footer
      %s22 = sadd.s32 1, %s18
    $region7: #{tpu_custom_call.1} parent=1 // loop_footer_branch
      %17 = sbr.rel target = $region3
    $region8: #{tpu_custom_call.1} parent=1 // loop_exit
      _
    %1336 = vsyncpa [#allocation5], 1
    %s1337 = scalar_lea.sflag [#allocation5], 1
    %1338 = vsyncpa %s1337, 1
    %1339 = vsyncpa [#allocation7], 1
    %s1340 = scalar_lea.sflag [#allocation7], 1
    %1341 = vsyncpa %s1340, 1

</llo_original>
